<compile_context>
chip_gen: v5e
topology: v5e:2x2
jax: 0.10.0
libtpu: 0.0.40
codegen_flags: <defaults>
</compile_context>

<pallas_src>
import jax
import jax.numpy as jnp
from jax.experimental import pallas as pl
from jax.experimental.pallas import tpu as pltpu

EPS = 1e-5


def _bn_train_lanes(h, gamma, beta):
    """BatchNorm1d (training mode) with the batch on the lane axis.

    h: (features, B).  Mean and *biased* variance over the batch (lanes),
    two-pass/centered for numerical parity with PyTorch; the rsqrt lands on
    the EUP (separate bundle slot).
    """
    mean = jnp.mean(h, axis=1, keepdims=True)             # (F, 1)  XLU reduce
    c = h - mean
    var = jnp.mean(c * c, axis=1, keepdims=True)          # biased variance
    return c * (gamma * jax.lax.rsqrt(var + EPS)) + beta


def qnet_kernel(x_ref, w1_ref, w2_ref, p_ref, o_ref):
    dim = w1_ref.shape[0]          # W1: (dim, 2*dim)   (PyTorch (out, in))
    seq = w2_ref.shape[0]          # W2: (seq, dim)

    # Packed small parameters, one DMA.  Column layout (each a (width,) col):
    #   [b1, g1, be1, b2, g2, be2, w3, b3]
    p = p_ref[...]                                         # (width, 8) f32
    b1, g1, be1 = p[:dim, 0:1], p[:dim, 1:2], p[:dim, 2:3]
    b2, g2, be2 = p[:seq, 3:4], p[:seq, 4:5], p[:seq, 5:6]
    w3 = p[:seq, 6:7]                                      # (seq, 1)
    b3 = p[0:1, 7:8]                                       # (1, 1)

    # Cast x in VMEM (f32 DMA'd once; no wrapper-side bf16 round trip).
    x = x_ref[...].astype(jnp.bfloat16)                    # (B, 2*dim)

    # --- layer 1: h1^T = W1 @ x^T  (contract last dims of both; bf16 MXU,
    #     f32 accumulation) -> ReLU -> BN over lanes ---
    h1t = jax.lax.dot_general(
        w1_ref[...], x, (((1,), (1,)), ((), ())),
        preferred_element_type=jnp.float32) + b1           # (dim, B)
    h1t = jnp.maximum(h1t, 0.0)
    h1t = _bn_train_lanes(h1t, g1, be1)

    # --- layer 2: h2^T = W2 @ h1^T -> ReLU -> BN over lanes ---
    h2t = jnp.dot(w2_ref[...], h1t.astype(jnp.bfloat16),
                  preferred_element_type=jnp.float32) + b2  # (seq, B)
    h2t = jnp.maximum(h2t, 0.0)
    h2t = _bn_train_lanes(h2t, g2, be2)

    # --- layer 3: Linear(seq, 1) -> ReLU as a sublane-weighted sum.
    #     Produces a naturally lane-dense (1, B) row (unmasked stores). ---
    q = jnp.sum(h2t * w3, axis=0, keepdims=True) + b3       # (1, B)
    o_ref[...] = jnp.maximum(q, 0.0)


def _pack_small_params(params, dim, seq):
    """Pack all per-feature params + linear3 weight into one (width, 8) array,
    column-oriented for the transposed (features-on-sublanes) dataflow."""
    width = max(dim, seq, 8)

    def col(v, n):
        v = jnp.asarray(v, jnp.float32).reshape(-1)
        return jnp.pad(v, (0, width - n))

    cols = [col(params["b1"], dim), col(params["g1"], dim), col(params["be1"], dim),
            col(params["b2"], seq), col(params["g2"], seq), col(params["be2"], seq),
            col(params["w3"], seq), col(params["b3"], 1)]
    return jnp.stack(cols, axis=1)                          # (width, 8)


def q_network_forward(x, params):
    """x: (B, 2*dim) float32. params: dict of weights (see init_params)."""
    B = x.shape[0]
    dim = params["w1"].shape[0]
    seq = params["w2"].shape[0]

    # Weights are reused across calls -> pre-cast once here (eager, outside
    # any jit).  x stays f32 and is cast inside the kernel.
    w1b = params["w1"].astype(jnp.bfloat16)                 # (dim, 2*dim)
    w2b = params["w2"].astype(jnp.bfloat16)                 # (seq, dim)
    packed = _pack_small_params(params, dim, seq)           # (width, 8) f32

    flops = 2 * B * (2 * dim * dim + dim * seq + seq)
    bytes_accessed = (x.size * 4 + w1b.size * 2 + w2b.size * 2
                      + packed.size * 4 + B * 4)
    cost = pl.CostEstimate(flops=flops, transcendentals=dim + seq,
                           bytes_accessed=bytes_accessed)

    # VMEM budget: operands + f32 intermediates with 2x headroom, capped well
    # below v7x's 64 MiB physical VMEM (and safe vs v5e's 16 MiB scoped
    # default for the shapes this kernel is used at).
    need = (x.size * 4 + w1b.size * 2 + w2b.size * 2 + packed.size * 4
            + B * (dim + seq + 1) * 4) * 2 + (1 << 20)
    vmem_limit = int(min(max(need, 16 * 1024 * 1024), 48 * 1024 * 1024))

    # Small model: every operand fits in VMEM as a single full-array block
    # (default BlockSpecs), so no grid is needed.
    out_t = pl.pallas_call(
        qnet_kernel,
        out_shape=jax.ShapeDtypeStruct((1, B), jnp.float32),  # lane-dense
        compiler_params=pltpu.CompilerParams(vmem_limit_bytes=vmem_limit),
        cost_estimate=cost,
    )(x, w1b, w2b, packed)
    return out_t.reshape(B, 1)


def init_params(key, dim, sequence_len):
    """Deterministic synthetic init matching the PyTorch layer shapes.

    Linear weights are stored in PyTorch (out, in) orientation (exactly what
    the transposed-dataflow kernel consumes).  BN gamma=1, beta=0 (defaults).
    """
    ks = jax.random.split(key, 6)

    def lin(kw, kb, fan_in, fan_out):
        bound = 1.0 / (fan_in ** 0.5)
        w = jax.random.uniform(kw, (fan_out, fan_in), jnp.float32, -bound, bound)
        b = jax.random.uniform(kb, (fan_out,), jnp.float32, -bound, bound)
        return w, b

    w1, b1 = lin(ks[0], ks[1], 2 * dim, dim)
    w2, b2 = lin(ks[2], ks[3], dim, sequence_len)
    w3, b3 = lin(ks[4], ks[5], sequence_len, 1)
    return {
        "w1": w1, "b1": b1,
        "g1": jnp.ones((dim,), jnp.float32),
        "be1": jnp.zeros((dim,), jnp.float32),
        "w2": w2, "b2": b2,
        "g2": jnp.ones((sequence_len,), jnp.float32),
        "be2": jnp.zeros((sequence_len,), jnp.float32),
        "w3": w3, "b3": b3,
    }


def q_network_ref(x, p):
    """Pure-JAX reference with the same bf16-matmul / f32-BN numerics."""
    def bn(h, g, be):
        mean = jnp.mean(h, axis=0, keepdims=True)
        c = h - mean
        var = jnp.mean(c * c, axis=0, keepdims=True)
        return c * (g * jax.lax.rsqrt(var + EPS)) + be

    h = jnp.dot(x.astype(jnp.bfloat16), p["w1"].T.astype(jnp.bfloat16),
                preferred_element_type=jnp.float32) + p["b1"]
    h = jnp.maximum(h, 0.0)
    h = bn(h, p["g1"], p["be1"])
    h = jnp.dot(h.astype(jnp.bfloat16), p["w2"].T.astype(jnp.bfloat16),
                preferred_element_type=jnp.float32) + p["b2"]
    h = jnp.maximum(h, 0.0)
    h = bn(h, p["g2"], p["be2"])
    q = h @ p["w3"].T + p["b3"]
    return jnp.maximum(q, 0.0)


if __name__ == "__main__":
    dim = 32
    sequence_len = 8
    batch = 8

    key = jax.random.PRNGKey(0)
    kx, kp = jax.random.split(key)
    x = jax.random.normal(kx, (batch, 2 * dim), jnp.float32)
    params = init_params(kp, dim, sequence_len)

    out = jax.block_until_ready(q_network_forward(x, params))
    ref = jax.block_until_ready(q_network_ref(x, params))

    assert out.shape == (batch, 1)
    assert jnp.allclose(out, ref, atol=1e-2, rtol=1e-2), (out, ref)

    print("KERNEL_OK")
</pallas_src>

<mosaic_0001>
module attributes {stable_mosaic.version = 11 : i64} {
  func.func @qnet_kernel(%arg0: memref<8x64xf32, #tpu.memory_space<vmem>>, %arg1: memref<32x64xbf16, #tpu.memory_space<vmem>>, %arg2: memref<8x32xbf16, #tpu.memory_space<vmem>>, %arg3: memref<32x8xf32, #tpu.memory_space<vmem>>, %arg4: memref<1x8xf32, #tpu.memory_space<vmem>>) attributes {dimension_semantics = [], scalar_prefetch = 0 : i64, scratch_operands = 0 : i64, tpu.core_type = #tpu.core_type<tc>} {
    %c0 = arith.constant 0 : index
    %c0_0 = arith.constant 0 : index
    %0 = vector.load %arg3[%c0, %c0_0] : memref<32x8xf32, #tpu.memory_space<vmem>>, vector<32x8xf32>
    %1 = vector.extract_strided_slice %0 {offsets = [0, 0], sizes = [32, 1], strides = [1, 1]} : vector<32x8xf32> to vector<32x1xf32>
    %2 = vector.extract_strided_slice %0 {offsets = [0, 1], sizes = [32, 1], strides = [1, 1]} : vector<32x8xf32> to vector<32x1xf32>
    %3 = vector.extract_strided_slice %0 {offsets = [0, 2], sizes = [32, 1], strides = [1, 1]} : vector<32x8xf32> to vector<32x1xf32>
    %4 = vector.extract_strided_slice %0 {offsets = [0, 3], sizes = [8, 1], strides = [1, 1]} : vector<32x8xf32> to vector<8x1xf32>
    %5 = vector.extract_strided_slice %0 {offsets = [0, 4], sizes = [8, 1], strides = [1, 1]} : vector<32x8xf32> to vector<8x1xf32>
    %6 = vector.extract_strided_slice %0 {offsets = [0, 5], sizes = [8, 1], strides = [1, 1]} : vector<32x8xf32> to vector<8x1xf32>
    %7 = vector.extract_strided_slice %0 {offsets = [0, 6], sizes = [8, 1], strides = [1, 1]} : vector<32x8xf32> to vector<8x1xf32>
    %8 = vector.extract_strided_slice %0 {offsets = [0, 7], sizes = [1, 1], strides = [1, 1]} : vector<32x8xf32> to vector<1x1xf32>
    %c0_1 = arith.constant 0 : index
    %c0_2 = arith.constant 0 : index
    %9 = vector.load %arg0[%c0_1, %c0_2] : memref<8x64xf32, #tpu.memory_space<vmem>>, vector<8x64xf32>
    %10 = arith.truncf %9 : vector<8x64xf32> to vector<8x64xbf16>
    %c0_3 = arith.constant 0 : index
    %c0_4 = arith.constant 0 : index
    %11 = vector.load %arg1[%c0_3, %c0_4] : memref<32x64xbf16, #tpu.memory_space<vmem>>, vector<32x64xbf16>
    %cst = arith.constant dense<0.000000e+00> : vector<32x8xf32>
    %12 = tpu.matmul %11, %10, %cst {dimension_numbers = #tpu.dot_dimension_numbers<[1], [1], [0], [0], [0, 0, 1, 0], [], []>} : vector<32x64xbf16>, vector<8x64xbf16>, vector<32x8xf32> -> vector<32x8xf32>
    %13 = vector.broadcast %1 : vector<32x1xf32> to vector<32x8xf32>
    %14 = arith.addf %12, %13 : vector<32x8xf32>
    %cst_5 = arith.constant 0.000000e+00 : f32
    %15 = vector.broadcast %cst_5 : f32 to vector<32x8xf32>
    %16 = arith.maximumf %14, %15 : vector<32x8xf32>
    %cst_6 = arith.constant dense<0.000000e+00> : vector<32xf32>
    %17 = vector.multi_reduction <add>, %16, %cst_6 [1] : vector<32x8xf32> to vector<32xf32>
    %18 = vector.shape_cast %17 : vector<32xf32> to vector<32x1xf32>
    %cst_7 = arith.constant 8.000000e+00 : f32
    %19 = vector.broadcast %cst_7 : f32 to vector<32x1xf32>
    %20 = arith.divf %18, %19 : vector<32x1xf32>
    %21 = vector.broadcast %20 : vector<32x1xf32> to vector<32x8xf32>
    %22 = arith.subf %16, %21 : vector<32x8xf32>
    %23 = arith.mulf %22, %22 : vector<32x8xf32>
    %cst_8 = arith.constant dense<0.000000e+00> : vector<32xf32>
    %24 = vector.multi_reduction <add>, %23, %cst_8 [1] : vector<32x8xf32> to vector<32xf32>
    %25 = vector.shape_cast %24 : vector<32xf32> to vector<32x1xf32>
    %cst_9 = arith.constant 8.000000e+00 : f32
    %26 = vector.broadcast %cst_9 : f32 to vector<32x1xf32>
    %27 = arith.divf %25, %26 : vector<32x1xf32>
    %cst_10 = arith.constant 9.99999974E-6 : f32
    %28 = vector.broadcast %cst_10 : f32 to vector<32x1xf32>
    %29 = arith.addf %27, %28 : vector<32x1xf32>
    %30 = math.rsqrt %29 : vector<32x1xf32>
    %31 = arith.mulf %2, %30 : vector<32x1xf32>
    %32 = vector.broadcast %31 : vector<32x1xf32> to vector<32x8xf32>
    %33 = arith.mulf %22, %32 : vector<32x8xf32>
    %34 = vector.broadcast %3 : vector<32x1xf32> to vector<32x8xf32>
    %35 = arith.addf %33, %34 : vector<32x8xf32>
    %c0_11 = arith.constant 0 : index
    %c0_12 = arith.constant 0 : index
    %36 = vector.load %arg2[%c0_11, %c0_12] : memref<8x32xbf16, #tpu.memory_space<vmem>>, vector<8x32xbf16>
    %37 = arith.truncf %35 : vector<32x8xf32> to vector<32x8xbf16>
    %cst_13 = arith.constant dense<0.000000e+00> : vector<8x8xf32>
    %38 = tpu.matmul %36, %37, %cst_13 {dimension_numbers = #tpu.dot_dimension_numbers<[1], [0], [0], [1], [0, 0, 1, 1], [], []>} : vector<8x32xbf16>, vector<32x8xbf16>, vector<8x8xf32> -> vector<8x8xf32>
    %39 = vector.broadcast %4 : vector<8x1xf32> to vector<8x8xf32>
    %40 = arith.addf %38, %39 : vector<8x8xf32>
    %cst_14 = arith.constant 0.000000e+00 : f32
    %41 = vector.broadcast %cst_14 : f32 to vector<8x8xf32>
    %42 = arith.maximumf %40, %41 : vector<8x8xf32>
    %cst_15 = arith.constant dense<0.000000e+00> : vector<8xf32>
    %43 = vector.multi_reduction <add>, %42, %cst_15 [1] : vector<8x8xf32> to vector<8xf32>
    %44 = vector.shape_cast %43 : vector<8xf32> to vector<8x1xf32>
    %cst_16 = arith.constant 8.000000e+00 : f32
    %45 = vector.broadcast %cst_16 : f32 to vector<8x1xf32>
    %46 = arith.divf %44, %45 : vector<8x1xf32>
    %47 = vector.broadcast %46 : vector<8x1xf32> to vector<8x8xf32>
    %48 = arith.subf %42, %47 : vector<8x8xf32>
    %49 = arith.mulf %48, %48 : vector<8x8xf32>
    %cst_17 = arith.constant dense<0.000000e+00> : vector<8xf32>
    %50 = vector.multi_reduction <add>, %49, %cst_17 [1] : vector<8x8xf32> to vector<8xf32>
    %51 = vector.shape_cast %50 : vector<8xf32> to vector<8x1xf32>
    %cst_18 = arith.constant 8.000000e+00 : f32
    %52 = vector.broadcast %cst_18 : f32 to vector<8x1xf32>
    %53 = arith.divf %51, %52 : vector<8x1xf32>
    %cst_19 = arith.constant 9.99999974E-6 : f32
    %54 = vector.broadcast %cst_19 : f32 to vector<8x1xf32>
    %55 = arith.addf %53, %54 : vector<8x1xf32>
    %56 = math.rsqrt %55 : vector<8x1xf32>
    %57 = arith.mulf %5, %56 : vector<8x1xf32>
    %58 = vector.broadcast %57 : vector<8x1xf32> to vector<8x8xf32>
    %59 = arith.mulf %48, %58 : vector<8x8xf32>
    %60 = vector.broadcast %6 : vector<8x1xf32> to vector<8x8xf32>
    %61 = arith.addf %59, %60 : vector<8x8xf32>
    %62 = vector.broadcast %7 : vector<8x1xf32> to vector<8x8xf32>
    %63 = arith.mulf %61, %62 : vector<8x8xf32>
    %cst_20 = arith.constant dense<0.000000e+00> : vector<8xf32>
    %64 = vector.multi_reduction <add>, %63, %cst_20 [0] : vector<8x8xf32> to vector<8xf32>
    %65 = vector.shape_cast %64 : vector<8xf32> to vector<1x8xf32>
    %66 = vector.broadcast %8 : vector<1x1xf32> to vector<1x8xf32>
    %67 = arith.addf %65, %66 : vector<1x8xf32>
    %cst_21 = arith.constant 0.000000e+00 : f32
    %68 = vector.broadcast %cst_21 : f32 to vector<1x8xf32>
    %69 = arith.maximumf %67, %68 : vector<1x8xf32>
    %c0_22 = arith.constant 0 : index
    %c0_23 = arith.constant 0 : index
    %70 = vector.load %arg4[%c0_22, %c0_23] : memref<1x8xf32, #tpu.memory_space<vmem>>, vector<1x8xf32>
    tpu.vector_store %arg4[%c0_22, %c0_23], %69 {strides = array<i32>} : memref<1x8xf32, #tpu.memory_space<vmem>>, vector<1x8xf32>,
    return
  }
}

</mosaic_0001>

<llo_original>
// kernel: tpu_custom_call.1
$region0: #{tpu_custom_call.1}
  #allocation0 [shape = 'u32[]', space=smem, size = 0x4, offset = 0x4, fixed_abs, tag = 'smem constant byte address 0x4 - core index']
  #allocation1 [shape = 'u32[72,128]{1,0:T(1,128)}', space=vmem, size = 0x9000, scoped, tag = 'internal scratch']
  %s0 = inlined_call_operand.vmem [shape: f32[8,64], index: 0, kind: input, shape index: {}]
  %s1 = inlined_call_operand.vmem [shape: bf16[32,64], index: 1, kind: input, shape index: {}]
  %s2 = inlined_call_operand.vmem [shape: bf16[8,32], index: 2, kind: input, shape index: {}]
  %s3 = inlined_call_operand.vmem [shape: f32[32,8], index: 3, kind: input, shape index: {}]
  %s4 = inlined_call_operand.hbm [shape: f32[1,8], index: 4, kind: output, shape index: {}]
  %s5 = sld [smem:[#allocation0]]
  $region26: #{tpu_custom_call.1} parent=0
    _
  %s7 = ssub.s32 1, %s5
  %s8 = scalar_select 0, %s7, %s5
  $region1: #{tpu_custom_call.1} parent=0
    #allocation2 [shape = 'u8[512]{0}', space=vmem, size = 0x400, scoped, tag = 'output window, operand 0, single buffered']
    #allocation3 [shape = 's32[1]{0}', space=sflag, size = 0x4, scoped, tag = 'scoped memory for tpu_custom_call.1']
    %9 = vsyncpa [#allocation3], 0
    // Predicated region
    $region2: #{tpu_custom_call.1} parent=1 // pred_check
      _
    $region3: #{tpu_custom_call.1} parent=1 // pred_check_branch
      %11 = sbr.rel (0) target = $region5
    $region4: #{tpu_custom_call.1} parent=1 // pred_region
      _
    $region5: #{tpu_custom_call.1} parent=1 // pred_fallthru
      _
    // Predicated region
    $region6: #{tpu_custom_call.1} parent=1 // pred_check
      _
    $region7: #{tpu_custom_call.1} parent=1 // pred_check_branch
      %13 = sbr.rel (0) target = $region9
    $region8: #{tpu_custom_call.1} parent=1 // pred_region
      _
    $region9: #{tpu_custom_call.1} parent=1 // pred_fallthru
      _
    // Predicated region
    $region10: #{tpu_custom_call.1} parent=1 // pred_check
      _
    $region11: #{tpu_custom_call.1} parent=1 // pred_check_branch
      %15 = sbr.rel (0) target = $region13
    $region12: #{tpu_custom_call.1} parent=1 // pred_region
      _
    $region13: #{tpu_custom_call.1} parent=1 // pred_fallthru
      _
    // Predicated region
    $region14: #{tpu_custom_call.1} parent=1 // pred_check
      _
    $region15: #{tpu_custom_call.1} parent=1 // pred_check_branch
      %17 = sbr.rel (0) target = $region17
    $region16: #{tpu_custom_call.1} parent=1 // pred_region
      _
    $region17: #{tpu_custom_call.1} parent=1 // pred_fallthru
      _
    %v19 = vld [vmem:[%s3] sm:$0xff]
    %v20 = vld [vmem:[%s3 + $0x8] sm:$0xff]
    %v21 = vld [vmem:[%s3 + $0x10] sm:$0xff]
    %v22 = vld [vmem:[%s3 + $0x18] sm:$0xff]
    %v23 = vld [vmem:[%s0] sm:$0xff]
    %v24 = vpack.c.bf16 %v23, %v23
    %v25 = vld [vmem:[%s1] sm:$0xf]
    %v26 = vld [vmem:[%s1 + $0x4] sm:$0xf]
    %v27 = vld [vmem:[%s1 + $0x8] sm:$0xf]
    %v28 = vld [vmem:[%s1 + $0xc] sm:$0xf]
    %30 = vset.pattern.permute.xlu0 0
    %31 = vperm.xlu0 %30, %v19
    %v32 = vpop.permute.xlu0 %31
    %35 = vset.pattern.permute.xlu0 0
    %36 = vperm.xlu0 %35, %v20
    %v37 = vpop.permute.xlu0 %36
    %40 = vset.pattern.permute.xlu0 0
    %41 = vperm.xlu0 %40, %v21
    %v42 = vpop.permute.xlu0 %41
    %45 = vset.pattern.permute.xlu0 0
    %46 = vperm.xlu0 %45, %v22
    %v47 = vpop.permute.xlu0 %46
    %v53 = vunpack.c.l.b16 %v25
    %v54 = vunpack.c.l.b16 %v26
    %v55 = vunpack.c.l.b16 %v27
    %v56 = vunpack.c.l.b16 %v28
    %v57 = vpack.c.b16 %v54, %v53
    %v58 = vpack.c.b16 %v56, %v55
    %vm59 = vcmask 523264
    %v61 = vsel %vm59, %v57, 0
    %v64 = vsel %vm59, %v58, 0
    %v67 = vsel %vm59, %v24, 0
    %69 = vmatpush.bf16.xpose.msra.mxu0 0
    %70 = vmatpush.bf16.xpose.msra.mxu0 0
    %71 = vmatpush.bf16.xpose.msra.mxu0 0
    %72 = vmatpush.bf16.xpose.msra.mxu0 0
    %73 = vmatpush.bf16.xpose.msra.mxu0 0
    %74 = vmatpush.bf16.xpose.msra.mxu0 0
    %75 = vmatpush.bf16.xpose.msra.mxu0 0
    %76 = vmatpush.bf16.xpose.msra.mxu0 %v67
    %77 = vmatmul.bf16.gmra.mxu0 %v61
    %v78 = vpop.f32.mrf.mxu0
    %v79 = vadd.f32 %v32, %v78
    %v80 = vpop.f32.mrf.mxu0
    %v81 = vadd.f32 %v37, %v80
    %82 = vmatmul.bf16.gmra.mxu0 %v64
    %v83 = vpop.f32.mrf.mxu0
    %v84 = vadd.f32 %v42, %v83
    %v85 = vpop.f32.mrf.mxu0
    %v86 = vadd.f32 %v47, %v85
    %87 = vdwg.mxu0
    %v88 = vmax.f32 %v79, 0.0
    %v89 = vmax.f32 %v81, 0.0
    %v90 = vmax.f32 %v84, 0.0
    %v91 = vmax.f32 %v86, 0.0
    %vm92 = vcmask 64512
    %v93 = vsel %vm92, %v88, 0.0
    %94 = vadd.xlane.f32.xlu0 %v93
    %v95 = vpop.xlane.xlu0 %94
    %v96 = vsel %vm92, %v89, 0.0
    %97 = vadd.xlane.f32.xlu0 %v96
    %v98 = vpop.xlane.xlu0 %97
    %v99 = vsel %vm92, %v90, 0.0
    %100 = vadd.xlane.f32.xlu0 %v99
    %v101 = vpop.xlane.xlu0 %100
    %v102 = vsel %vm92, %v91, 0.0
    %103 = vadd.xlane.f32.xlu0 %v102
    %v104 = vpop.xlane.xlu0 %103
    %v105 = vrcp.pop 8.0
    %v106 = vmul.f32 8.0, %v105
    %v107 = vsub.f32 1.0, %v106
    %v108 = vmul.f32 %v105, %v107
    %v109 = vadd.f32 %v105, %v108
    %vm110 = vweird.f32 %v105
    %v111 = vsel %vm110, %v105, %v109
    %v112 = vmul.f32 %v95, %v111
    %v113 = vmul.f32 %v98, %v111
    %v114 = vmul.f32 %v101, %v111
    %v115 = vmul.f32 %v104, %v111
    %v116 = vsub.f32 %v88, %v112
    %v117 = vsub.f32 %v89, %v113
    %v118 = vsub.f32 %v90, %v114
    %v119 = vsub.f32 %v91, %v115
    %v120 = vmul.f32 %v116, %v116
    %v121 = vmul.f32 %v117, %v117
    %v122 = vmul.f32 %v118, %v118
    %v123 = vmul.f32 %v119, %v119
    %v124 = vsel %vm92, %v120, 0.0
    %125 = vadd.xlane.f32.xlu0 %v124
    %v126 = vpop.xlane.xlu0 %125
    %v127 = vsel %vm92, %v121, 0.0
    %128 = vadd.xlane.f32.xlu0 %v127
    %v129 = vpop.xlane.xlu0 %128
    %v130 = vsel %vm92, %v122, 0.0
    %131 = vadd.xlane.f32.xlu0 %v130
    %v132 = vpop.xlane.xlu0 %131
    %v133 = vsel %vm92, %v123, 0.0
    %134 = vadd.xlane.f32.xlu0 %v133
    %v135 = vpop.xlane.xlu0 %134
    %v136 = vmul.f32 %v126, %v111
    %v137 = vmul.f32 %v129, %v111
    %v138 = vmul.f32 %v132, %v111
    %v139 = vmul.f32 %v135, %v111
    %v140 = vadd.f32 %v136, 1e-05
    %v141 = vadd.f32 %v137, 1e-05
    %v142 = vadd.f32 %v138, 1e-05
    %v143 = vadd.f32 %v139, 1e-05
    %v144 = vrsqrt.pop %v140
    %v145 = vmul.f32 %v144, %v140
    %v146 = vmul.f32 %v145, %v144
    %v147 = vmul.f32 0.5, %v146
    %v148 = vsub.f32 1.5, %v147
    %v149 = vmul.f32 %v144, %v148
    %vm150 = vweird.f32 %v140
    %vm151 = vweird.f32 %v144
    %vm152 = vmor %vm150, %vm151
    %v153 = vsel %vm152, %v144, %v149
    %v154 = vrsqrt.pop %v141
    %v155 = vmul.f32 %v154, %v141
    %v156 = vmul.f32 %v155, %v154
    %v157 = vmul.f32 0.5, %v156
    %v158 = vsub.f32 1.5, %v157
    %v159 = vmul.f32 %v154, %v158
    %vm160 = vweird.f32 %v141
    %vm161 = vweird.f32 %v154
    %vm162 = vmor %vm160, %vm161
    %v163 = vsel %vm162, %v154, %v159
    %v164 = vrsqrt.pop %v142
    %v165 = vmul.f32 %v164, %v142
    %v166 = vmul.f32 %v165, %v164
    %v167 = vmul.f32 0.5, %v166
    %v168 = vsub.f32 1.5, %v167
    %v169 = vmul.f32 %v164, %v168
    %vm170 = vweird.f32 %v142
    %vm171 = vweird.f32 %v164
    %vm172 = vmor %vm170, %vm171
    %v173 = vsel %vm172, %v164, %v169
    %v174 = vrsqrt.pop %v143
    %v175 = vmul.f32 %v174, %v143
    %v176 = vmul.f32 %v175, %v174
    %v177 = vmul.f32 0.5, %v176
    %v178 = vsub.f32 1.5, %v177
    %v179 = vmul.f32 %v174, %v178
    %vm180 = vweird.f32 %v143
    %vm181 = vweird.f32 %v174
    %vm182 = vmor %vm180, %vm181
    %v183 = vsel %vm182, %v174, %v179
    %v184 = vmul.f32 %v19, %v153
    %v185 = vmul.f32 %v20, %v163
    %v186 = vmul.f32 %v21, %v173
    %v187 = vmul.f32 %v22, %v183
    %189 = vset.pattern.permute.xlu0 1
    %190 = vperm.xlu0 %189, %v184
    %v191 = vpop.permute.xlu0 %190
    %194 = vset.pattern.permute.xlu0 1
    %195 = vperm.xlu0 %194, %v185
    %v196 = vpop.permute.xlu0 %195
    %199 = vset.pattern.permute.xlu0 1
    %200 = vperm.xlu0 %199, %v186
    %v201 = vpop.permute.xlu0 %200
    %204 = vset.pattern.permute.xlu0 1
    %205 = vperm.xlu0 %204, %v187
    %v206 = vpop.permute.xlu0 %205
    %v208 = vmul.f32 %v116, %v191
    %v209 = vmul.f32 %v117, %v196
    %v210 = vmul.f32 %v118, %v201
    %v211 = vmul.f32 %v119, %v206
    %212 = vset.pattern.permute.xlu0 2
    %213 = vperm.xlu0 %212, %v19
    %v214 = vpop.permute.xlu0 %213
    %216 = vset.pattern.permute.xlu0 2
    %217 = vperm.xlu0 %216, %v20
    %v218 = vpop.permute.xlu0 %217
    %220 = vset.pattern.permute.xlu0 2
    %221 = vperm.xlu0 %220, %v21
    %v222 = vpop.permute.xlu0 %221
    %224 = vset.pattern.permute.xlu0 2
    %225 = vperm.xlu0 %224, %v22
    %v226 = vpop.permute.xlu0 %225
    %v228 = vadd.f32 %v208, %v214
    %v229 = vadd.f32 %v209, %v218
    %v230 = vadd.f32 %v210, %v222
    %v231 = vadd.f32 %v211, %v226
    %v232 = vld [vmem:[%s2] sm:$0xf]
    %v233 = vpack.c.bf16 %v229, %v228
    %v234 = vpack.c.bf16 %v231, %v230
    %235 = vset.pattern.permute.xlu0 3
    %236 = vperm.xlu0 %235, %v19
    %v237 = vpop.permute.xlu0 %236
    %vm239 = vcmask 261120
    %v241 = vsel %vm239, %v232, 0
    %243 = vmatpush.bf16.msra.mxu0 0
    %244 = vmatpush.bf16.msra.mxu0 0
    %245 = vmatpush.bf16.msra.mxu0 0
    %246 = vmatpush.bf16.msra.mxu0 0
    %247 = vmatpush.bf16.msra.mxu0 0
    %248 = vmatpush.bf16.msra.mxu0 0
    %249 = vmatpush.bf16.msra.mxu0 %v234
    %250 = vmatpush.bf16.msra.mxu0 %v233
    %251 = vmatmul.bf16.gmra.mxu0 %v241
    %v252 = vpop.f32.mrf.mxu0
    %v253 = vadd.f32 %v237, %v252
    %v254 = vpop.f32.mrf.mxu0
    %255 = vdwg.mxu0
    %v256 = vmax.f32 %v253, 0.0
    %v257 = vsel %vm92, %v256, 0.0
    %258 = vadd.xlane.f32.xlu0 %v257
    %v259 = vpop.xlane.xlu0 %258
    %v260 = vmul.f32 %v259, %v111
    %v261 = vsub.f32 %v256, %v260
    %v262 = vmul.f32 %v261, %v261
    %v263 = vsel %vm92, %v262, 0.0
    %264 = vadd.xlane.f32.xlu0 %v263
    %v265 = vpop.xlane.xlu0 %264
    %v266 = vmul.f32 %v265, %v111
    %v267 = vadd.f32 %v266, 1e-05
    %v268 = vrsqrt.pop %v267
    %v269 = vmul.f32 %v268, %v267
    %v270 = vmul.f32 %v269, %v268
    %v271 = vmul.f32 0.5, %v270
    %v272 = vsub.f32 1.5, %v271
    %v273 = vmul.f32 %v268, %v272
    %vm274 = vweird.f32 %v267
    %vm275 = vweird.f32 %v268
    %vm276 = vmor %vm274, %vm275
    %v277 = vsel %vm276, %v268, %v273
    %v278 = vmul.f32 %v19, %v277
    %280 = vset.pattern.permute.xlu0 4
    %281 = vperm.xlu0 %280, %v278
    %v282 = vpop.permute.xlu0 %281
    %v284 = vmul.f32 %v261, %v282
    %285 = vset.pattern.permute.xlu0 5
    %286 = vperm.xlu0 %285, %v19
    %v287 = vpop.permute.xlu0 %286
    %v289 = vadd.f32 %v284, %v287
    %290 = vset.pattern.permute.xlu0 6
    %291 = vperm.xlu0 %290, %v19
    %v292 = vpop.permute.xlu0 %291
    %v294 = vmul.f32 %v289, %v292
    %v295 = vsel %vm92, %v294, 0.0
    %v296 = vrot.slane %v295, 4
    %v297 = vadd.f32 %v295, %v296
    %v298 = vrot.slane %v297, 2
    %v299 = vadd.f32 %v297, %v298
    %v300 = vrot.slane %v299, 1
    %v301 = vadd.f32 %v299, %v300
    %302 = vset.pattern.permute.xlu0 7
    %303 = vperm.xlu0 %302, %v19
    %v304 = vpop.permute.xlu0 %303
    %v306 = vadd.f32 %v301, %v304
    %v307 = vmax.f32 %v306, 0.0
    %vm308 = vcmask 57344
    %309 = vst.msk [vmem:[#allocation2] sm:$0x1] %vm308, %v307
    // Predicated region
    $region18: #{tpu_custom_call.1} parent=1 // pred_check
      _
    $region19: #{tpu_custom_call.1} parent=1 // pred_check_branch
      %311 = sbr.rel (0) target = $region21
    $region20: #{tpu_custom_call.1} parent=1 // pred_region
      %313 = vsyncadd [#allocation3], 0
      %s315 = sshll.u32 [#allocation2], 4
      %s316 = int_to_ptr.vmem [resolvable:$true] %s315
      %s317 = sshll.u32 %s4, 4
      %s318 = int_to_ptr.hbm [resolvable:$true] %s317
      %320 = dma.vmem_to_hbm [thread:$0]  %s316, 16, %s318, [#allocation3]
    $region21: #{tpu_custom_call.1} parent=1 // pred_fallthru
      _
    // Predicated region
    $region22: #{tpu_custom_call.1} parent=1 // pred_check
      _
    $region23: #{tpu_custom_call.1} parent=1 // pred_check_branch
      %322 = sbr.rel (0) target = $region25
    $region24: #{tpu_custom_call.1} parent=1 // pred_region
      %324 = dma.done [#allocation3], 16
    $region25: #{tpu_custom_call.1} parent=1 // pred_fallthru
      _
    %325 = vsyncpa [#allocation3], 1

</llo_original>
